<compile_context>
chip_gen: v7x
topology: tpu7x:2x2x1
jax: 0.10.0
libtpu: 0.0.40
codegen_flags: <defaults>
</compile_context>

<pallas_src>
import jax
import jax.numpy as jnp
from jax.experimental import pallas as pl
from jax.experimental.pallas import tpu as pltpu


def _meanfusor_kernel(x_ref, w1_ref, b1_ref, w2_ref, b2_ref, w3_ref, b3_ref, out_ref):
    # x_ref  : (N, D, Tt) f32 tile of latent (T on lanes)
    # w1_ref : (2D, D) bf16 stacked [W1a; W1b];  b1_ref: (D, 1) f32
    # w2_ref : (1, D)  bf16 weight_fc row;       b2_ref: (1, 1) f32 scalar in SMEM
    # w3_ref : (D, D)  bf16 output_fc;           b3_ref: (D, 1) f32
    # out_ref: (D, Tt) f32 — module's native output layout, lane-dense stores.
    n, d, _ = x_ref.shape

    w1 = w1_ref[...]                                   # (2D, D) bf16
    b1 = b1_ref[...]                                   # (D, 1)
    w2 = w2_ref[...]                                   # (1, D) bf16
    b2 = b2_ref[0, 0]                                  # scalar (SMEM)

    # ---- input_fc: one stacked matmul per sample ----
    # w1 @ x_i = [W1a @ x_i ; W1b @ x_i]; averaging the bottom halves over i gives
    # W1b @ mean directly, so no explicit mean tensor / extra matmul is needed.
    tops = []
    bottom_sum = None
    for i in range(n):
        xi = x_ref[i].astype(jnp.bfloat16)             # per-sample Ref read, no full-tile copy
        y = jnp.dot(w1, xi, preferred_element_type=jnp.float32)   # (2D, Tt) f32
        tops.append(y[:d, :])
        bot = y[d:, :]
        bottom_sum = bot if bottom_sum is None else bottom_sum + bot
    shared = bottom_sum * (1.0 / n) + b1               # W1b @ mean + b1, (D, Tt)

    # ---- gf + weight_fc logits ----
    gfs = []
    logits = []
    for i in range(n):
        g = jnp.maximum(tops[i] + shared, 0.0)         # input_fc ReLU, (D, Tt)
        gfs.append(g)
        # Linear(D, 1) as a (1,D)@(D,Tt) MXU dot (frees VALU/XLU slots).
        l = jnp.dot(w2, g.astype(jnp.bfloat16), preferred_element_type=jnp.float32) + b2
        logits.append(jnp.maximum(l, 0.0))             # (1, Tt)

    # ---- softmax over fusion axis N (pairwise over static N; no concat / axis-0 reduce) ----
    m = logits[0]
    for i in range(1, n):
        m = jnp.maximum(m, logits[i])
    exps = [jnp.exp(l - m) for l in logits]
    denom = exps[0]
    for i in range(1, n):
        denom = denom + exps[i]
    inv = pl.reciprocal(denom, approx=True)            # EUP slot

    # ---- weighted sum over N ----
    wgf = gfs[0] * (exps[0] * inv)
    for i in range(1, n):
        wgf = wgf + gfs[i] * (exps[i] * inv)           # (D, Tt)

    # ---- output_fc + ReLU, directly in (D, T) layout ----
    out = jnp.dot(w3_ref[...], wgf.astype(jnp.bfloat16),
                  preferred_element_type=jnp.float32) + b3_ref[...]
    out_ref[...] = jnp.maximum(out, 0.0)               # (D, Tt)


def _round_up(x, m):
    return -(-x // m) * m


def _vmem_capacity_bytes():
    try:
        return int(pltpu.get_tpu_info().vmem_capacity_bytes)
    except Exception:
        return 64 * 1024 * 1024    # conservative: v7x per-TensorCore VMEM


def _pick_t_tile(N, D, T, vmem_cap):
    """Largest lane-dense (multiple of 128) T tile fitting a generation-aware VMEM
    budget, keeping >= 2 grid steps so both v7x TensorCores get tiles."""
    budget = int(vmem_cap * 0.35)      # tile blocks + intermediates; rest: weights/scratch
    # f32 bytes per T column: double-buffered x & out blocks, stacked matmul outputs,
    # gf list, shared/wgf, plus bf16 casts of x and gf.
    bytes_per_t = 4 * (2 * N * D + 2 * D) + 4 * (3 * N * D + 3 * D) + 2 * (2 * N * D)
    cap_cols = max(128, budget // max(bytes_per_t, 1))

    t_pad128 = _round_up(T, 128)
    tile = 128
    while tile * 2 <= min(cap_cols, 8192):
        tile *= 2
    tile = min(tile, t_pad128)
    if t_pad128 >= 256:                # guarantee at least 2 grid steps
        tile = min(tile, max(128, ((t_pad128 // 2) // 128) * 128))
    return tile


def _vmem_limit_bytes(N, D, t_tile, vmem_cap):
    blocks = 4 * t_tile * (2 * N * D + 2 * D)                    # double-buffered in/out (f32)
    weights = 2 * (2 * D * D + D + D * D) + 4 * (2 * D + 1)      # bf16 weights + f32 biases
    interm = t_tile * (4 * (3 * N * D + 3 * D) + 2 * (2 * N * D))
    est = blocks + weights + interm + (8 << 20)                  # compiler-scratch slack
    return int(min(max(est, 32 << 20), int(vmem_cap * 0.9)))


def meanfusor_forward(latent, params, *, t_tile=None):
    """latent: (N, D, T) f32 -> (D, T) f32, matching meanfusor.forward (ReLU activation)."""
    w1, b1, w2, b2, w3, b3 = params
    N, D, T = latent.shape
    vmem_cap = _vmem_capacity_bytes()
    if t_tile is None:
        t_tile = _pick_t_tile(N, D, T, vmem_cap)
    assert t_tile % 128 == 0, t_tile

    t_pad = _round_up(T, t_tile)
    if t_pad != T:
        # Columns are independent (mean/softmax act over N, matmuls contract over D),
        # so zero-padding the sequence axis and slicing the result is exact.
        latent = jnp.pad(latent, ((0, 0), (0, 0), (0, t_pad - T)))

    def resident(shape):
        # Same block every grid step -> loaded once, stays resident in VMEM.
        return pl.BlockSpec(shape, lambda t: (0,) * len(shape))

    out = pl.pallas_call(
        _meanfusor_kernel,
        grid=(t_pad // t_tile,),
        in_specs=[
            pl.BlockSpec((N, D, t_tile), lambda t: (0, 0, t)),   # latent T-tile
            resident((2 * D, D)),                                # stacked [W1a; W1b] (bf16)
            resident((D, 1)),                                    # b1
            resident((1, D)),                                    # weight_fc row (bf16)
            pl.BlockSpec(memory_space=pltpu.MemorySpace.SMEM),   # b2 scalar
            resident((D, D)),                                    # W3 (bf16)
            resident((D, 1)),                                    # b3
        ],
        out_specs=pl.BlockSpec((D, t_tile), lambda t: (0, t)),
        out_shape=jax.ShapeDtypeStruct((D, t_pad), jnp.float32),
        compiler_params=pltpu.CompilerParams(
            dimension_semantics=("parallel",),                   # shard T tiles across TCs
            vmem_limit_bytes=_vmem_limit_bytes(N, D, t_tile, vmem_cap),
        ),
    )(latent, w1, b1, w2, b2, w3, b3)

    return out[:, :T] if t_pad != T else out


def make_params(key, latent_size):
    """Deterministic synthetic parameters in torch layout (out, in), plus kernel layout."""
    D = latent_size
    ks = jax.random.split(key, 6)
    a1 = 0.1 * jax.random.normal(ks[0], (D, 2 * D), jnp.float32)   # input_fc.weight
    b1 = 0.1 * jax.random.normal(ks[1], (D,), jnp.float32)
    a2 = 0.1 * jax.random.normal(ks[2], (1, D), jnp.float32)       # weight_fc.weight
    b2 = 0.1 * jax.random.normal(ks[3], (1,), jnp.float32)
    a3 = 0.1 * jax.random.normal(ks[4], (D, D), jnp.float32)       # output_fc.weight
    b3 = 0.1 * jax.random.normal(ks[5], (D,), jnp.float32)
    raw = (a1, b1, a2, b2, a3, b3)
    kernel_params = (
        jnp.concatenate([a1[:, :D], a1[:, D:]], axis=0).astype(jnp.bfloat16),  # (2D, D)
        b1.reshape(D, 1),                  # b1 column (f32)
        a2.astype(jnp.bfloat16),           # (1, D) weight_fc row
        b2.reshape(1, 1),                  # b2 scalar (SMEM, f32)
        a3.astype(jnp.bfloat16),           # (D, D) output_fc
        b3.reshape(D, 1),                  # b3 column (f32)
    )
    return kernel_params, raw


def reference(latent, raw_params):
    """Pure-JAX f32 replica of the PyTorch forward (correctness check)."""
    a1, b1, a2, b2, a3, b3 = raw_params
    mean = jnp.mean(latent, axis=0)
    feat = jnp.concatenate([latent, jnp.broadcast_to(mean, latent.shape)], axis=1)
    feat = jnp.transpose(feat, (0, 2, 1))                          # (N, T, 2D)
    gf = jax.nn.relu(feat @ a1.T + b1)                             # (N, T, D)
    w = jax.nn.softmax(jax.nn.relu(gf @ a2.T + b2), axis=0)        # (N, T, 1)
    wgf = jnp.sum(gf * w, axis=0)                                  # (T, D)
    out = jax.nn.relu(wgf @ a3.T + b3)
    return out.T                                                   # (D, T)


if __name__ == "__main__":
    # TODO(synk): conf.activation == 'GELU' branch not implemented; kernel assumes ReLU.
    N, D = 2, 32                           # fusion batch, latent_size
    key = jax.random.PRNGKey(0)
    k1, k2, k3 = jax.random.split(key, 3)
    params, raw_params = make_params(k3, D)

    # Aligned T (2-step pipelined/parallel grid) and unaligned T (exercises pad + slice).
    for T, k in ((256, k1), (200, k2)):
        latent = jax.random.normal(k, (N, D, T), jnp.float32)
        out = jax.block_until_ready(meanfusor_forward(latent, params))
        ref = reference(latent, raw_params)
        assert out.shape == (D, T), out.shape
        # tolerance covers bf16 MXU operands + the EUP approx reciprocal in the softmax
        err = float(jnp.max(jnp.abs(out - ref)))
        assert jnp.allclose(out, ref, atol=3e-2, rtol=2e-2), err

    print("KERNEL_OK")
</pallas_src>

<mosaic_0001>
module attributes {stable_mosaic.version = 11 : i64} {
  func.func @_meanfusor_kernel(%arg0: i32, %arg1: memref<2x32x128xf32, #tpu.memory_space<vmem>>, %arg2: memref<64x32xbf16, #tpu.memory_space<vmem>>, %arg3: memref<32x1xf32, #tpu.memory_space<vmem>>, %arg4: memref<1x32xbf16, #tpu.memory_space<vmem>>, %arg5: memref<1x1xf32, #tpu.memory_space<smem>>, %arg6: memref<32x32xbf16, #tpu.memory_space<vmem>>, %arg7: memref<32x1xf32, #tpu.memory_space<vmem>>, %arg8: memref<32x128xf32, #tpu.memory_space<vmem>>) attributes {dimension_semantics = [#tpu.dimension_semantics<parallel>], iteration_bounds = array<i64: 2>, scalar_prefetch = 0 : i64, scratch_operands = 0 : i64, tpu.core_type = #tpu.core_type<tc>, window_params = [{transform_indices = @transform_0, window_bounds = array<i64: 2, 32, 128>}, {pipeline_mode = #tpu.pipeline_mode<synchronous>, transform_indices = @transform_1, window_bounds = array<i64: 64, 32>}, {pipeline_mode = #tpu.pipeline_mode<synchronous>, transform_indices = @transform_2, window_bounds = array<i64: 32, 1>}, {pipeline_mode = #tpu.pipeline_mode<synchronous>, transform_indices = @transform_3, window_bounds = array<i64: 1, 32>}, {transform_indices = @transform_4, window_bounds = array<i64: 1, 1>}, {pipeline_mode = #tpu.pipeline_mode<synchronous>, transform_indices = @transform_5, window_bounds = array<i64: 32, 32>}, {pipeline_mode = #tpu.pipeline_mode<synchronous>, transform_indices = @transform_6, window_bounds = array<i64: 32, 1>}, {transform_indices = @transform_7, window_bounds = array<i64: 32, 128>}]} {
    %c0 = arith.constant 0 : index
    %c0_0 = arith.constant 0 : index
    %0 = vector.load %arg2[%c0, %c0_0] : memref<64x32xbf16, #tpu.memory_space<vmem>>, vector<64x32xbf16>
    %c0_1 = arith.constant 0 : index
    %c0_2 = arith.constant 0 : index
    %1 = vector.load %arg3[%c0_1, %c0_2] : memref<32x1xf32, #tpu.memory_space<vmem>>, vector<32x1xf32>
    %c0_3 = arith.constant 0 : index
    %c0_4 = arith.constant 0 : index
    %2 = vector.load %arg4[%c0_3, %c0_4] : memref<1x32xbf16, #tpu.memory_space<vmem>>, vector<1x32xbf16>
    %c0_5 = arith.constant 0 : index
    %c0_6 = arith.constant 0 : index
    %3 = memref.load %arg5[%c0_5, %c0_6] : memref<1x1xf32, #tpu.memory_space<smem>>
    %c0_7 = arith.constant 0 : index
    %c0_8 = arith.constant 0 : index
    %c0_9 = arith.constant 0 : index
    %4 = vector.load %arg1[%c0_7, %c0_8, %c0_9] : memref<2x32x128xf32, #tpu.memory_space<vmem>>, vector<1x32x128xf32>
    %5 = vector.shape_cast %4 : vector<1x32x128xf32> to vector<32x128xf32>
    %6 = arith.truncf %5 : vector<32x128xf32> to vector<32x128xbf16>
    %cst = arith.constant dense<0.000000e+00> : vector<64x128xf32>
    %7 = tpu.matmul %0, %6, %cst {dimension_numbers = #tpu.dot_dimension_numbers<[1], [0], [0], [1], [0, 0, 1, 1], [], []>} : vector<64x32xbf16>, vector<32x128xbf16>, vector<64x128xf32> -> vector<64x128xf32>
    %8 = vector.extract_strided_slice %7 {offsets = [0, 0], sizes = [32, 128], strides = [1, 1]} : vector<64x128xf32> to vector<32x128xf32>
    %9 = vector.extract_strided_slice %7 {offsets = [32, 0], sizes = [32, 128], strides = [1, 1]} : vector<64x128xf32> to vector<32x128xf32>
    %c1 = arith.constant 1 : index
    %c0_10 = arith.constant 0 : index
    %c0_11 = arith.constant 0 : index
    %10 = vector.load %arg1[%c1, %c0_10, %c0_11] : memref<2x32x128xf32, #tpu.memory_space<vmem>>, vector<1x32x128xf32>
    %11 = vector.shape_cast %10 : vector<1x32x128xf32> to vector<32x128xf32>
    %12 = arith.truncf %11 : vector<32x128xf32> to vector<32x128xbf16>
    %cst_12 = arith.constant dense<0.000000e+00> : vector<64x128xf32>
    %13 = tpu.matmul %0, %12, %cst_12 {dimension_numbers = #tpu.dot_dimension_numbers<[1], [0], [0], [1], [0, 0, 1, 1], [], []>} : vector<64x32xbf16>, vector<32x128xbf16>, vector<64x128xf32> -> vector<64x128xf32>
    %14 = vector.extract_strided_slice %13 {offsets = [0, 0], sizes = [32, 128], strides = [1, 1]} : vector<64x128xf32> to vector<32x128xf32>
    %15 = vector.extract_strided_slice %13 {offsets = [32, 0], sizes = [32, 128], strides = [1, 1]} : vector<64x128xf32> to vector<32x128xf32>
    %16 = arith.addf %9, %15 : vector<32x128xf32>
    %cst_13 = arith.constant 5.000000e-01 : f32
    %17 = vector.broadcast %cst_13 : f32 to vector<32x128xf32>
    %18 = arith.mulf %16, %17 : vector<32x128xf32>
    %19 = vector.broadcast %1 : vector<32x1xf32> to vector<32x128xf32>
    %20 = arith.addf %18, %19 : vector<32x128xf32>
    %21 = arith.addf %8, %20 : vector<32x128xf32>
    %cst_14 = arith.constant 0.000000e+00 : f32
    %22 = vector.broadcast %cst_14 : f32 to vector<32x128xf32>
    %23 = arith.maximumf %21, %22 : vector<32x128xf32>
    %24 = arith.truncf %23 : vector<32x128xf32> to vector<32x128xbf16>
    %cst_15 = arith.constant dense<0.000000e+00> : vector<1x128xf32>
    %25 = tpu.matmul %2, %24, %cst_15 {dimension_numbers = #tpu.dot_dimension_numbers<[1], [0], [0], [1], [0, 0, 1, 1], [], []>} : vector<1x32xbf16>, vector<32x128xbf16>, vector<1x128xf32> -> vector<1x128xf32>
    %26 = vector.broadcast %3 : f32 to vector<1x128xf32>
    %27 = arith.addf %25, %26 : vector<1x128xf32>
    %cst_16 = arith.constant 0.000000e+00 : f32
    %28 = vector.broadcast %cst_16 : f32 to vector<1x128xf32>
    %29 = arith.maximumf %27, %28 : vector<1x128xf32>
    %30 = arith.addf %14, %20 : vector<32x128xf32>
    %cst_17 = arith.constant 0.000000e+00 : f32
    %31 = vector.broadcast %cst_17 : f32 to vector<32x128xf32>
    %32 = arith.maximumf %30, %31 : vector<32x128xf32>
    %33 = arith.truncf %32 : vector<32x128xf32> to vector<32x128xbf16>
    %cst_18 = arith.constant dense<0.000000e+00> : vector<1x128xf32>
    %34 = tpu.matmul %2, %33, %cst_18 {dimension_numbers = #tpu.dot_dimension_numbers<[1], [0], [0], [1], [0, 0, 1, 1], [], []>} : vector<1x32xbf16>, vector<32x128xbf16>, vector<1x128xf32> -> vector<1x128xf32>
    %35 = vector.broadcast %3 : f32 to vector<1x128xf32>
    %36 = arith.addf %34, %35 : vector<1x128xf32>
    %cst_19 = arith.constant 0.000000e+00 : f32
    %37 = vector.broadcast %cst_19 : f32 to vector<1x128xf32>
    %38 = arith.maximumf %36, %37 : vector<1x128xf32>
    %39 = arith.maximumf %29, %38 : vector<1x128xf32>
    %40 = arith.subf %29, %39 : vector<1x128xf32>
    %41 = math.exp %40 : vector<1x128xf32>
    %42 = arith.subf %38, %39 : vector<1x128xf32>
    %43 = math.exp %42 : vector<1x128xf32>
    %44 = arith.addf %41, %43 : vector<1x128xf32>
    %45 = tpu.reciprocal %44 {approx = true} : vector<1x128xf32> -> vector<1x128xf32>
    %46 = arith.mulf %41, %45 : vector<1x128xf32>
    %47 = vector.broadcast %46 : vector<1x128xf32> to vector<32x128xf32>
    %48 = arith.mulf %23, %47 : vector<32x128xf32>
    %49 = arith.mulf %43, %45 : vector<1x128xf32>
    %50 = vector.broadcast %49 : vector<1x128xf32> to vector<32x128xf32>
    %51 = arith.mulf %32, %50 : vector<32x128xf32>
    %52 = arith.addf %48, %51 : vector<32x128xf32>
    %c0_20 = arith.constant 0 : index
    %c0_21 = arith.constant 0 : index
    %53 = vector.load %arg6[%c0_20, %c0_21] : memref<32x32xbf16, #tpu.memory_space<vmem>>, vector<32x32xbf16>
    %54 = arith.truncf %52 : vector<32x128xf32> to vector<32x128xbf16>
    %cst_22 = arith.constant dense<0.000000e+00> : vector<32x128xf32>
    %55 = tpu.matmul %53, %54, %cst_22 {dimension_numbers = #tpu.dot_dimension_numbers<[1], [0], [0], [1], [0, 0, 1, 1], [], []>} : vector<32x32xbf16>, vector<32x128xbf16>, vector<32x128xf32> -> vector<32x128xf32>
    %c0_23 = arith.constant 0 : index
    %c0_24 = arith.constant 0 : index
    %56 = vector.load %arg7[%c0_23, %c0_24] : memref<32x1xf32, #tpu.memory_space<vmem>>, vector<32x1xf32>
    %57 = vector.broadcast %56 : vector<32x1xf32> to vector<32x128xf32>
    %58 = arith.addf %55, %57 : vector<32x128xf32>
    %cst_25 = arith.constant 0.000000e+00 : f32
    %59 = vector.broadcast %cst_25 : f32 to vector<32x128xf32>
    %60 = arith.maximumf %58, %59 : vector<32x128xf32>
    %c0_26 = arith.constant 0 : index
    %c0_27 = arith.constant 0 : index
    %61 = vector.load %arg8[%c0_26, %c0_27] : memref<32x128xf32, #tpu.memory_space<vmem>>, vector<32x128xf32>
    tpu.vector_store %arg8[%c0_26, %c0_27], %60 {strides = array<i32>} : memref<32x128xf32, #tpu.memory_space<vmem>>, vector<32x128xf32>,
    return
  }
  func.func @transform_0(%arg0: i32) -> (i32, i32, i32) {
    %c0_i32 = arith.constant 0 : i32
    %c0_i32_0 = arith.constant 0 : i32
    %c0_i32_1 = arith.constant 0 : i32
    return %c0_i32, %c0_i32_0, %arg0 : i32, i32, i32
  }
  func.func @transform_1(%arg0: i32) -> (i32, i32) {
    %c0_i32 = arith.constant 0 : i32
    %c0_i32_0 = arith.constant 0 : i32
    %c0_i32_1 = arith.constant 0 : i32
    return %c0_i32, %c0_i32_0 : i32, i32
  }
  func.func @transform_2(%arg0: i32) -> (i32, i32) {
    %c0_i32 = arith.constant 0 : i32
    %c0_i32_0 = arith.constant 0 : i32
    %c0_i32_1 = arith.constant 0 : i32
    return %c0_i32, %c0_i32_0 : i32, i32
  }
  func.func @transform_3(%arg0: i32) -> (i32, i32) {
    %c0_i32 = arith.constant 0 : i32
    %c0_i32_0 = arith.constant 0 : i32
    %c0_i32_1 = arith.constant 0 : i32
    return %c0_i32, %c0_i32_0 : i32, i32
  }
  func.func @transform_4(%arg0: i32) -> (i32, i32) {
    %c0_i32 = arith.constant 0 : i32
    %c0_i32_0 = arith.constant 0 : i32
    %c0_i32_1 = arith.constant 0 : i32
    return %c0_i32, %c0_i32_0 : i32, i32
  }
  func.func @transform_5(%arg0: i32) -> (i32, i32) {
    %c0_i32 = arith.constant 0 : i32
    %c0_i32_0 = arith.constant 0 : i32
    %c0_i32_1 = arith.constant 0 : i32
    return %c0_i32, %c0_i32_0 : i32, i32
  }
  func.func @transform_6(%arg0: i32) -> (i32, i32) {
    %c0_i32 = arith.constant 0 : i32
    %c0_i32_0 = arith.constant 0 : i32
    %c0_i32_1 = arith.constant 0 : i32
    return %c0_i32, %c0_i32_0 : i32, i32
  }
  func.func @transform_7(%arg0: i32) -> (i32, i32) {
    %c0_i32 = arith.constant 0 : i32
    %c0_i32_0 = arith.constant 0 : i32
    return %c0_i32, %arg0 : i32, i32
  }
}

</mosaic_0001>

<llo_original>
// kernel: tpu_custom_call.1
$region0: #{tpu_custom_call.1}
  #allocation0 [shape = 'u32[]', space=smem, size = 0x4, offset = 0x4, fixed_abs, tag = 'smem constant byte address 0x4 - core index']
  #allocation1 [shape = 'u32[144,128]{1,0:T(1,128)}', space=vmem, size = 0x12000, scoped, tag = 'internal scratch']
  #allocation2 [shape = 'f32[1,1]{1,0:T(1,128)S(6)}', space=smem, size = 0x200, scoped, tag = 'scoped memory for tpu_custom_call.1']
  %s0 = inlined_call_operand.hbm [shape: f32[2,32,256], index: 0, kind: input, shape index: {}]
  %s1 = inlined_call_operand.vmem [shape: bf16[64,32], index: 1, kind: input, shape index: {}]
  %s2 = inlined_call_operand.vmem [shape: f32[32,1], index: 2, kind: input, shape index: {}]
  %s3 = inlined_call_operand.vmem [shape: bf16[1,32], index: 3, kind: input, shape index: {}]
  %s4 = inlined_call_operand.<no memory space> [shape: f32[1,1], index: 4, kind: input, shape index: {}]
  %s5 = inlined_call_operand.vmem [shape: bf16[32,32], index: 5, kind: input, shape index: {}]
  %s6 = inlined_call_operand.vmem [shape: f32[32,1], index: 6, kind: input, shape index: {}]
  %s7 = inlined_call_operand.hbm [shape: f32[32,256], index: 7, kind: output, shape index: {}]
  %s8 = sld [smem:[#allocation0]]
  $region65: #{tpu_custom_call.1} parent=0
    _
  %s10 = ssub.s32 1, %s8
  %s11 = scalar_select 0, %s10, %s8
  %12 = sst [smem:[#allocation2]] %s4
  $region1: #{tpu_custom_call.1} parent=0
    #allocation3 [shape = 'u8[65536]{0}', space=vmem, size = 0x10000, scoped, tag = 'input window, operand 0']
    #allocation4 [shape = 's32[2]{0}', space=sflag, size = 0x8, scoped, tag = 'scoped memory for tpu_custom_call.1']
    #allocation5 [shape = 's32[2]{0}', space=sflag, size = 0x8, scoped, tag = 'scoped memory for tpu_custom_call.1']
    #allocation6 [shape = 'u8[32768]{0}', space=vmem, size = 0x8000, scoped, tag = 'output window, operand 0']
    %13 = vsyncpa [#allocation4], 0
    %s14 = scalar_lea.sflag [#allocation4], 1
    %15 = vsyncpa %s14, 0
    %16 = vsyncpa [#allocation5], 0
    %s17 = scalar_lea.sflag [#allocation5], 1
    %18 = vsyncpa %s17, 0
    loop: start=0, step=1, limit=4
    $region2: #{tpu_custom_call.1} parent=1 // loop_pre_header
      _
    $region3: #{tpu_custom_call.1} parent=1 // loop_header
      %s20 = sphi 0, %s24
      %p21 = scmp.ge.s32.totalorder %s20, 4
      %s30 = sphi 0, %s32
      %s33 = sphi 0, %s30
      %s34 = sphi 0, %s33
      %s50 = sphi 0, %s34
      %s54 = sphi 0, %s54
      %s56 = sphi 0, %s54
      %s57 = sphi 0, %s56
      %s71 = sphi 0, %s57
      %s75 = sphi 0, %s75
      %s77 = sphi 0, %s75
      %s78 = sphi 0, %s77
      %s92 = sphi 0, %s78
      %s96 = sphi 0, %s96
      %s98 = sphi 0, %s96
      %s99 = sphi 0, %s98
      %s113 = sphi 0, %s99
      %s117 = sphi 0, %s117
      %s119 = sphi 0, %s117
      %s120 = sphi 0, %s119
      %s134 = sphi 0, %s120
      %s138 = sphi 0, %s138
      %s140 = sphi 0, %s138
      %s141 = sphi 0, %s140
      %s155 = sphi 0, %s141
      %s159 = sphi 0, %s159
      %s161 = sphi 0, %s159
      %s162 = sphi 0, %s161
      %s176 = sphi 0, %s162
      %s182 = sphi 0, %s184
      %s185 = sphi 0, %s182
      %s186 = sphi 0, %s185
      %s202 = sphi 0, %s186
    $region4: #{tpu_custom_call.1} parent=1 // loop_header_branch
      %23 = sbr.rel (%p21) target = $region8
    $region5: #{tpu_custom_call.1} parent=1 // loop_body
      %s25 = ssub.s32 %s20, 1
      %s26 = ssub.s32 %s20, 2
      %s27 = sadd.s32 %s20, 1
      %s28 = ssub.s32 %s20, %s27
      %p29 = scmp.eq.s32.totalorder %s28, 0
      %s31 = sadd.s32 %s30, 1
      %s32 = scalar_select %p29, %s30, %s31
      %p35 = pneg %p29
      %p36 = scmp.eq.s32.totalorder %s20, 1
      %p37 = por %p35, %p36
      %p38 = scmp.ne.s32.totalorder %s30, %s33
      %p39 = scmp.eq.s32.totalorder %s20, 0
      %p40 = por %p38, %p39
      %p41 = scmp.ne.s32.totalorder %s30, %s33
      %p42 = scmp.eq.s32.totalorder %s25, 1
      %p43 = por %p41, %p42
      %p44 = scmp.ne.s32.totalorder %s33, %s34
      %p45 = scmp.eq.s32.totalorder %s25, 0
      %p46 = por %p44, %p45
      %p47 = scmp.ne.s32.totalorder %s33, %s34
      %p48 = scmp.eq.s32.totalorder %s26, 1
      %p49 = por %p47, %p48
      %p51 = scmp.ne.s32.totalorder %s34, %s50
      %p52 = scmp.eq.s32.totalorder %s26, 0
      %p53 = por %p51, %p52
      %s55 = sadd.s32 %s54, 1
      %p58 = scmp.eq.s32.totalorder %s20, 1
      %p59 = scmp.ne.s32.totalorder %s54, %s56
      %p60 = scmp.eq.s32.totalorder %s20, 0
      %p61 = por %p59, %p60
      %p62 = scmp.ne.s32.totalorder %s54, %s56
      %p63 = scmp.eq.s32.totalorder %s25, 1
      %p64 = por %p62, %p63
      %p65 = scmp.ne.s32.totalorder %s56, %s57
      %p66 = scmp.eq.s32.totalorder %s25, 0
      %p67 = por %p65, %p66
      %p68 = scmp.ne.s32.totalorder %s56, %s57
      %p69 = scmp.eq.s32.totalorder %s26, 1
      %p70 = por %p68, %p69
      %p72 = scmp.ne.s32.totalorder %s57, %s71
      %p73 = scmp.eq.s32.totalorder %s26, 0
      %p74 = por %p72, %p73
      %s76 = sadd.s32 %s75, 1
      %p79 = scmp.eq.s32.totalorder %s20, 1
      %p80 = scmp.ne.s32.totalorder %s75, %s77
      %p81 = scmp.eq.s32.totalorder %s20, 0
      %p82 = por %p80, %p81
      %p83 = scmp.ne.s32.totalorder %s75, %s77
      %p84 = scmp.eq.s32.totalorder %s25, 1
      %p85 = por %p83, %p84
      %p86 = scmp.ne.s32.totalorder %s77, %s78
      %p87 = scmp.eq.s32.totalorder %s25, 0
      %p88 = por %p86, %p87
      %p89 = scmp.ne.s32.totalorder %s77, %s78
      %p90 = scmp.eq.s32.totalorder %s26, 1
      %p91 = por %p89, %p90
      %p93 = scmp.ne.s32.totalorder %s78, %s92
      %p94 = scmp.eq.s32.totalorder %s26, 0
      %p95 = por %p93, %p94
      %s97 = sadd.s32 %s96, 1
      %p100 = scmp.eq.s32.totalorder %s20, 1
      %p101 = scmp.ne.s32.totalorder %s96, %s98
      %p102 = scmp.eq.s32.totalorder %s20, 0
      %p103 = por %p101, %p102
      %p104 = scmp.ne.s32.totalorder %s96, %s98
      %p105 = scmp.eq.s32.totalorder %s25, 1
      %p106 = por %p104, %p105
      %p107 = scmp.ne.s32.totalorder %s98, %s99
      %p108 = scmp.eq.s32.totalorder %s25, 0
      %p109 = por %p107, %p108
      %p110 = scmp.ne.s32.totalorder %s98, %s99
      %p111 = scmp.eq.s32.totalorder %s26, 1
      %p112 = por %p110, %p111
      %p114 = scmp.ne.s32.totalorder %s99, %s113
      %p115 = scmp.eq.s32.totalorder %s26, 0
      %p116 = por %p114, %p115
      %s118 = sadd.s32 %s117, 1
      %p121 = scmp.eq.s32.totalorder %s20, 1
      %p122 = scmp.ne.s32.totalorder %s117, %s119
      %p123 = scmp.eq.s32.totalorder %s20, 0
      %p124 = por %p122, %p123
      %p125 = scmp.ne.s32.totalorder %s117, %s119
      %p126 = scmp.eq.s32.totalorder %s25, 1
      %p127 = por %p125, %p126
      %p128 = scmp.ne.s32.totalorder %s119, %s120
      %p129 = scmp.eq.s32.totalorder %s25, 0
      %p130 = por %p128, %p129
      %p131 = scmp.ne.s32.totalorder %s119, %s120
      %p132 = scmp.eq.s32.totalorder %s26, 1
      %p133 = por %p131, %p132
      %p135 = scmp.ne.s32.totalorder %s120, %s134
      %p136 = scmp.eq.s32.totalorder %s26, 0
      %p137 = por %p135, %p136
      %s139 = sadd.s32 %s138, 1
      %p142 = scmp.eq.s32.totalorder %s20, 1
      %p143 = scmp.ne.s32.totalorder %s138, %s140
      %p144 = scmp.eq.s32.totalorder %s20, 0
      %p145 = por %p143, %p144
      %p146 = scmp.ne.s32.totalorder %s138, %s140
      %p147 = scmp.eq.s32.totalorder %s25, 1
      %p148 = por %p146, %p147
      %p149 = scmp.ne.s32.totalorder %s140, %s141
      %p150 = scmp.eq.s32.totalorder %s25, 0
      %p151 = por %p149, %p150
      %p152 = scmp.ne.s32.totalorder %s140, %s141
      %p153 = scmp.eq.s32.totalorder %s26, 1
      %p154 = por %p152, %p153
      %p156 = scmp.ne.s32.totalorder %s141, %s155
      %p157 = scmp.eq.s32.totalorder %s26, 0
      %p158 = por %p156, %p157
      %s160 = sadd.s32 %s159, 1
      %p163 = scmp.eq.s32.totalorder %s20, 1
      %p164 = scmp.ne.s32.totalorder %s159, %s161
      %p165 = scmp.eq.s32.totalorder %s20, 0
      %p166 = por %p164, %p165
      %p167 = scmp.ne.s32.totalorder %s159, %s161
      %p168 = scmp.eq.s32.totalorder %s25, 1
      %p169 = por %p167, %p168
      %p170 = scmp.ne.s32.totalorder %s161, %s162
      %p171 = scmp.eq.s32.totalorder %s25, 0
      %p172 = por %p170, %p171
      %p173 = scmp.ne.s32.totalorder %s161, %s162
      %p174 = scmp.eq.s32.totalorder %s26, 1
      %p175 = por %p173, %p174
      %p177 = scmp.ne.s32.totalorder %s162, %s176
      %p178 = scmp.eq.s32.totalorder %s26, 0
      %p179 = por %p177, %p178
      %s180 = ssub.s32 %s20, %s27
      %p181 = scmp.eq.s32.totalorder %s180, 0
      %s183 = sadd.s32 %s182, 1
      %s184 = scalar_select %p181, %s182, %s183
      %p187 = pneg %p181
      %p188 = scmp.eq.s32.totalorder %s20, 1
      %p189 = por %p187, %p188
      %p190 = scmp.ne.s32.totalorder %s182, %s185
      %p191 = scmp.eq.s32.totalorder %s20, 0
      %p192 = por %p190, %p191
      %p193 = scmp.ne.s32.totalorder %s182, %s185
      %p194 = scmp.eq.s32.totalorder %s25, 1
      %p195 = por %p193, %p194
      %p196 = scmp.ne.s32.totalorder %s185, %s186
      %p197 = scmp.eq.s32.totalorder %s25, 0
      %p198 = por %p196, %p197
      %p199 = scmp.ne.s32.totalorder %s185, %s186
      %p200 = scmp.eq.s32.totalorder %s26, 1
      %p201 = por %p199, %p200
      %p203 = scmp.ne.s32.totalorder %s186, %s202
      %p204 = scmp.eq.s32.totalorder %s26, 0
      %p205 = por %p203, %p204
      %p206 = scmp.le.s32.totalorder 1, %s20
      %p207 = scmp.lt.s32.totalorder %s20, 3
      %p208 = pnand %p206, %p207
      %p209 = pneg %p208
      // Predicated region
      $region9: #{tpu_custom_call.1} parent=5 // pred_check
        _
      $region10: #{tpu_custom_call.1} parent=5 // pred_check_branch
        %211 = sbr.rel (%p208) target = $region12
      $region11: #{tpu_custom_call.1} parent=5 // pred_region
        %s212 = ssub.s32 %s20, 1
        // Predicated region
        $region13: #{tpu_custom_call.1} parent=11 // pred_check
          %p213 = pneg %p67
        $region14: #{tpu_custom_call.1} parent=11 // pred_check_branch
          %215 = sbr.rel (%p213) target = $region16
        $region15: #{tpu_custom_call.1} parent=11 // pred_region
          _
        $region16: #{tpu_custom_call.1} parent=11 // pred_fallthru
          _
        // Predicated region
        $region17: #{tpu_custom_call.1} parent=11 // pred_check
          %p216 = pneg %p88
        $region18: #{tpu_custom_call.1} parent=11 // pred_check_branch
          %218 = sbr.rel (%p216) target = $region20
        $region19: #{tpu_custom_call.1} parent=11 // pred_region
          _
        $region20: #{tpu_custom_call.1} parent=11 // pred_fallthru
          _
        // Predicated region
        $region21: #{tpu_custom_call.1} parent=11 // pred_check
          %p219 = pneg %p109
        $region22: #{tpu_custom_call.1} parent=11 // pred_check_branch
          %221 = sbr.rel (%p219) target = $region24
        $region23: #{tpu_custom_call.1} parent=11 // pred_region
          _
        $region24: #{tpu_custom_call.1} parent=11 // pred_fallthru
          _
        // Predicated region
        $region25: #{tpu_custom_call.1} parent=11 // pred_check
          %p222 = pneg %p130
        $region26: #{tpu_custom_call.1} parent=11 // pred_check_branch
          %224 = sbr.rel (%p222) target = $region28
        $region27: #{tpu_custom_call.1} parent=11 // pred_region
          _
        $region28: #{tpu_custom_call.1} parent=11 // pred_fallthru
          _
        // Predicated region
        $region29: #{tpu_custom_call.1} parent=11 // pred_check
          %p225 = pneg %p151
        $region30: #{tpu_custom_call.1} parent=11 // pred_check_branch
          %227 = sbr.rel (%p225) target = $region32
        $region31: #{tpu_custom_call.1} parent=11 // pred_region
          _
        $region32: #{tpu_custom_call.1} parent=11 // pred_fallthru
          _
        // Predicated region
        $region33: #{tpu_custom_call.1} parent=11 // pred_check
          %p228 = pneg %p172
        $region34: #{tpu_custom_call.1} parent=11 // pred_check_branch
          %230 = sbr.rel (%p228) target = $region36
        $region35: #{tpu_custom_call.1} parent=11 // pred_region
          _
        $region36: #{tpu_custom_call.1} parent=11 // pred_fallthru
          _
      $region12: #{tpu_custom_call.1} parent=5 // pred_fallthru
        _
      %p231 = scmp.lt.s32.totalorder %s20, 2
      // Predicated region
      $region37: #{tpu_custom_call.1} parent=5 // pred_check
        %p232 = pneg %p231
      $region38: #{tpu_custom_call.1} parent=5 // pred_check_branch
        %234 = sbr.rel (%p232) target = $region40
      $region39: #{tpu_custom_call.1} parent=5 // pred_region
        // Predicated region
        $region41: #{tpu_custom_call.1} parent=39 // pred_check
          %p235 = pneg %p40
        $region42: #{tpu_custom_call.1} parent=39 // pred_check_branch
          %237 = sbr.rel (%p235) target = $region44
        $region43: #{tpu_custom_call.1} parent=39 // pred_region
          %s238 = sand.u32 %s30, 1
          %s239 = scalar_lea.sflag [#allocation4], %s238
          %s240 = sand.u32 %s30, 1
          %s241 = smul.addr %s240, 64
          %s242 = scalar_lea.vmem [#allocation3], %s241
          %s244 = ssub.s32 1024, 1024
          %245 = vsyncadd %s239, %s244
          %s246 = smul.addr %s20, 128
          %s247 = scalar_lea.hbm %s0, %s246
          %s248 = sshll.u32 %s242, 4
          %s249 = int_to_ptr.vmem [resolvable:$true] %s248
          %254 = dma.hbm_to_vmem [thread:$0]  %s247, 1024, %s249, %s239, 256, 128, 8
        $region44: #{tpu_custom_call.1} parent=39 // pred_fallthru
          _
      $region40: #{tpu_custom_call.1} parent=5 // pred_fallthru
        _
      %p255 = scmp.le.s32.totalorder 1, %s20
      %p256 = scmp.lt.s32.totalorder %s20, 3
      %p257 = pnand %p255, %p256
      %p258 = pneg %p257
      // Predicated region
      $region45: #{tpu_custom_call.1} parent=5 // pred_check
        _
      $region46: #{tpu_custom_call.1} parent=5 // pred_check_branch
        %260 = sbr.rel (%p257) target = $region48
      $region47: #{tpu_custom_call.1} parent=5 // pred_region
        %s261 = ssub.s32 %s20, 1
        %s262 = sand.u32 %s33, 1
        %s263 = scalar_lea.sflag [#allocation4], %s262
        %s264 = sand.u32 %s33, 1
        %s265 = smul.addr %s264, 64
        %s266 = scalar_lea.vmem [#allocation3], %s265
        // Predicated region
        $region49: #{tpu_custom_call.1} parent=47 // pred_check
          %p267 = pneg %p46
        $region50: #{tpu_custom_call.1} parent=47 // pred_check_branch
          %269 = sbr.rel (%p267) target = $region52
        $region51: #{tpu_custom_call.1} parent=47 // pred_region
          %270 = dma.done %s263, 1024
        $region52: #{tpu_custom_call.1} parent=47 // pred_fallthru
          _
        %s271 = sand.u32 %s33, 1
        %s272 = scalar_lea.sflag [#allocation4], %s271
        %s273 = sand.u32 %s33, 1
        %s274 = smul.addr %s273, 64
        %s275 = scalar_lea.vmem [#allocation3], %s274
        %p276 = pneg %p46
        %p277 = pneg %p43
        %p278 = pneg %p67
        %p279 = pneg %p64
        %p280 = pneg %p88
        %p281 = pneg %p85
        %p282 = pneg %p109
        %p283 = pneg %p106
        %p284 = pneg %p130
        %p285 = pneg %p127
        %p286 = pneg %p151
        %p287 = pneg %p148
        %p288 = pneg %p172
        %p289 = pneg %p169
        %p290 = pneg %p198
        %p291 = pneg %p195
        %s292 = sand.u32 %s185, 1
        %s293 = scalar_lea.sflag [#allocation5], %s292
        %s294 = sand.u32 %s185, 1
        %s295 = smul.addr %s294, 32
        %s296 = scalar_lea.vmem [#allocation6], %s295
        %v298 = vld [vmem:[%s1] sm:$0xf]
        %v299 = vld [vmem:[%s1 + $0x4] sm:$0xf]
        %v300 = vld [vmem:[%s1 + $0x8] sm:$0xf]
        %v301 = vld [vmem:[%s1 + $0xc] sm:$0xf]
        %v302 = vld [vmem:[%s1 + $0x10] sm:$0xf]
        %v303 = vld [vmem:[%s1 + $0x14] sm:$0xf]
        %v304 = vld [vmem:[%s1 + $0x18] sm:$0xf]
        %v305 = vld [vmem:[%s1 + $0x1c] sm:$0xf]
        %v306 = vld [vmem:[%s2] sm:$0xff]
        %v307 = vld [vmem:[%s2 + $0x8] sm:$0xff]
        %v308 = vld [vmem:[%s2 + $0x10] sm:$0xff]
        %v309 = vld [vmem:[%s2 + $0x18] sm:$0xff]
        %v310 = vld [vmem:[%s3] sm:$0x1]
        %s311 = sld [smem:[#allocation2]]
        %v312 = vld [vmem:[%s266] sm:$0xff]
        %v313 = vld [vmem:[%s266 + $0x8] sm:$0xff]
        %v314 = vld [vmem:[%s266 + $0x10] sm:$0xff]
        %v315 = vld [vmem:[%s266 + $0x18] sm:$0xff]
        %v316 = vpack.c.bf16 %v313, %v312
        %v317 = vpack.c.bf16 %v315, %v314
        %v326 = vunpack.c.l.b16 %v298
        %v327 = vunpack.c.l.b16 %v299
        %v328 = vunpack.c.l.b16 %v300
        %v329 = vunpack.c.l.b16 %v301
        %v330 = vunpack.c.l.b16 %v302
        %v331 = vunpack.c.l.b16 %v303
        %v332 = vunpack.c.l.b16 %v304
        %v333 = vunpack.c.l.b16 %v305
        %v334 = vpack.c.b16 %v327, %v326
        %v335 = vpack.c.b16 %v329, %v328
        %v336 = vpack.c.b16 %v331, %v330
        %v337 = vpack.c.b16 %v333, %v332
        %vm338 = vcmask 261120
        %v340 = vsel %vm338, %v334, 0
        %v343 = vsel %vm338, %v335, 0
        %v346 = vsel %vm338, %v336, 0
        %v349 = vsel %vm338, %v337, 0
        %351 = vmatprep.subr.bf16.mxu0 0
        %352 = vmatpush1.bf16.msra.mxu0 %v316
        %353 = vmatprep.subr.bf16.mxu0 0
        %354 = vmatpush1.bf16.msra.mxu0 %v317
        %355 = vmatprep.subr.bf16.mxu0 0
        %356 = vmatpush1.bf16.msra.mxu0 0
        %357 = vmatprep.subr.bf16.mxu0 0
        %358 = vmatpush1.bf16.msra.mxu0 0
        %359 = vmatprep.subr.bf16.mxu0 0
        %360 = vmatpush1.bf16.msra.mxu0 0
        %361 = vmatprep.subr.bf16.mxu0 0
        %362 = vmatpush1.bf16.msra.mxu0 0
        %363 = vmatprep.subr.bf16.mxu0 0
        %364 = vmatpush1.bf16.msra.mxu0 0
        %365 = vmatprep.subr.bf16.mxu0 0
        %366 = vmatpush1.bf16.msra.mxu0 0
        %367 = vmatprep.subr.bf16.mxu0 0
        %368 = vmatpush1.bf16.msra.mxu0 0
        %369 = vmatprep.subr.bf16.mxu0 0
        %370 = vmatpush1.bf16.msra.mxu0 0
        %371 = vmatprep.subr.bf16.mxu0 0
        %372 = vmatpush1.bf16.msra.mxu0 0
        %373 = vmatprep.subr.bf16.mxu0 0
        %374 = vmatpush1.bf16.msra.mxu0 0
        %375 = vmatprep.subr.bf16.mxu0 0
        %376 = vmatpush1.bf16.msra.mxu0 0
        %377 = vmatprep.subr.bf16.mxu0 0
        %378 = vmatpush1.bf16.msra.mxu0 0
        %379 = vmatprep.subr.bf16.mxu0 0
        %380 = vmatpush1.bf16.msra.mxu0 0
        %381 = vmatprep.subr.bf16.mxu0 0
        %382 = vmatpush1.bf16.msra.mxu0 0
        %383 = vmatprep.mubr.bf16.mxu0 0
        %384 = vmatmul.mubr.bf16.gmra.mrb[0].mxu0 %v340
        %v385 = vpop.f32.mrb[0].mxu0
        %v386 = vadd.f32 0.0, %v385
        %v387 = vpop.f32.mrb[0].mxu0
        %v388 = vpop.f32.mrb[0].mxu0
        %v389 = vadd.f32 0.0, %v388
        %v390 = vpop.f32.mrb[0].mxu0
        %391 = vmatprep.mubr.bf16.mxu0 0
        %392 = vmatmul.mubr.bf16.gmra.mrb[0].mxu0 %v343
        %v393 = vpop.f32.mrb[0].mxu0
        %v394 = vadd.f32 0.0, %v393
        %v395 = vpop.f32.mrb[0].mxu0
        %v396 = vpop.f32.mrb[0].mxu0
        %v397 = vadd.f32 0.0, %v396
        %v398 = vpop.f32.mrb[0].mxu0
        %399 = vmatprep.mubr.bf16.mxu0 0
        %400 = vmatmul.mubr.bf16.gmra.mrb[0].mxu0 %v346
        %v401 = vpop.f32.mrb[0].mxu0
        %v402 = vadd.f32 0.0, %v401
        %v403 = vpop.f32.mrb[0].mxu0
        %v404 = vpop.f32.mrb[0].mxu0
        %v405 = vadd.f32 0.0, %v404
        %v406 = vpop.f32.mrb[0].mxu0
        %407 = vmatprep.mubr.bf16.mxu0 0
        %408 = vmatmul.mubr.bf16.gmra.mrb[0].mxu0 %v349
        %v409 = vpop.f32.mrb[0].mxu0
        %v410 = vadd.f32 0.0, %v409
        %v411 = vpop.f32.mrb[0].mxu0
        %v412 = vpop.f32.mrb[0].mxu0
        %v413 = vadd.f32 0.0, %v412
        %v414 = vpop.f32.mrb[0].mxu0
        %415 = vdwg.mxu0
        %s416 = scalar_lea.vmem %s266, 32 [#allocation3]
        %v417 = vld [vmem:[%s416] sm:$0xff]
        %v418 = vld [vmem:[%s416 + $0x8] sm:$0xff]
        %v419 = vld [vmem:[%s416 + $0x10] sm:$0xff]
        %v420 = vld [vmem:[%s416 + $0x18] sm:$0xff]
        %v421 = vpack.c.bf16 %v418, %v417
        %v422 = vpack.c.bf16 %v420, %v419
        %423 = vmatprep.subr.bf16.mxu0 0
        %424 = vmatpush1.bf16.msra.mxu0 %v421
        %425 = vmatprep.subr.bf16.mxu0 0
        %426 = vmatpush1.bf16.msra.mxu0 %v422
        %427 = vmatprep.subr.bf16.mxu0 0
        %428 = vmatpush1.bf16.msra.mxu0 0
        %429 = vmatprep.subr.bf16.mxu0 0
        %430 = vmatpush1.bf16.msra.mxu0 0
        %431 = vmatprep.subr.bf16.mxu0 0
        %432 = vmatpush1.bf16.msra.mxu0 0
        %433 = vmatprep.subr.bf16.mxu0 0
        %434 = vmatpush1.bf16.msra.mxu0 0
        %435 = vmatprep.subr.bf16.mxu0 0
        %436 = vmatpush1.bf16.msra.mxu0 0
        %437 = vmatprep.subr.bf16.mxu0 0
        %438 = vmatpush1.bf16.msra.mxu0 0
        %439 = vmatprep.subr.bf16.mxu0 0
        %440 = vmatpush1.bf16.msra.mxu0 0
        %441 = vmatprep.subr.bf16.mxu0 0
        %442 = vmatpush1.bf16.msra.mxu0 0
        %443 = vmatprep.subr.bf16.mxu0 0
        %444 = vmatpush1.bf16.msra.mxu0 0
        %445 = vmatprep.subr.bf16.mxu0 0
        %446 = vmatpush1.bf16.msra.mxu0 0
        %447 = vmatprep.subr.bf16.mxu0 0
        %448 = vmatpush1.bf16.msra.mxu0 0
        %449 = vmatprep.subr.bf16.mxu0 0
        %450 = vmatpush1.bf16.msra.mxu0 0
        %451 = vmatprep.subr.bf16.mxu0 0
        %452 = vmatpush1.bf16.msra.mxu0 0
        %453 = vmatprep.subr.bf16.mxu0 0
        %454 = vmatpush1.bf16.msra.mxu0 0
        %455 = vmatprep.mubr.bf16.mxu0 0
        %456 = vmatmul.mubr.bf16.gmra.mrb[0].mxu0 %v340
        %v457 = vpop.f32.mrb[0].mxu0
        %v458 = vadd.f32 0.0, %v457
        %v459 = vpop.f32.mrb[0].mxu0
        %v460 = vpop.f32.mrb[0].mxu0
        %v461 = vadd.f32 0.0, %v460
        %v462 = vpop.f32.mrb[0].mxu0
        %463 = vmatprep.mubr.bf16.mxu0 0
        %464 = vmatmul.mubr.bf16.gmra.mrb[0].mxu0 %v343
        %v465 = vpop.f32.mrb[0].mxu0
        %v466 = vadd.f32 0.0, %v465
        %v467 = vpop.f32.mrb[0].mxu0
        %v468 = vpop.f32.mrb[0].mxu0
        %v469 = vadd.f32 0.0, %v468
        %v470 = vpop.f32.mrb[0].mxu0
        %471 = vmatprep.mubr.bf16.mxu0 0
        %472 = vmatmul.mubr.bf16.gmra.mrb[0].mxu0 %v346
        %v473 = vpop.f32.mrb[0].mxu0
        %v474 = vadd.f32 0.0, %v473
        %v475 = vpop.f32.mrb[0].mxu0
        %v476 = vpop.f32.mrb[0].mxu0
        %v477 = vadd.f32 0.0, %v476
        %v478 = vpop.f32.mrb[0].mxu0
        %479 = vmatprep.mubr.bf16.mxu0 0
        %480 = vmatmul.mubr.bf16.gmra.mrb[0].mxu0 %v349
        %v481 = vpop.f32.mrb[0].mxu0
        %v482 = vadd.f32 0.0, %v481
        %v483 = vpop.f32.mrb[0].mxu0
        %v484 = vpop.f32.mrb[0].mxu0
        %v485 = vadd.f32 0.0, %v484
        %v486 = vpop.f32.mrb[0].mxu0
        %487 = vdwg.mxu0
        %v488 = vadd.f32 %v402, %v474
        %v489 = vadd.f32 %v405, %v477
        %v490 = vadd.f32 %v410, %v482
        %v491 = vadd.f32 %v413, %v485
        %v492 = vmul.f32 %v488, 0.5
        %v493 = vmul.f32 %v489, 0.5
        %v494 = vmul.f32 %v490, 0.5
        %v495 = vmul.f32 %v491, 0.5
        %497 = vset.pattern.permute.xlu0 0
        %498 = vperm.xlu0 %497, %v306
        %v499 = vpop.permute.xlu0 %498
        %502 = vset.pattern.permute.xlu0 0
        %503 = vperm.xlu0 %502, %v307
        %v504 = vpop.permute.xlu0 %503
        %507 = vset.pattern.permute.xlu0 0
        %508 = vperm.xlu0 %507, %v308
        %v509 = vpop.permute.xlu0 %508
        %512 = vset.pattern.permute.xlu0 0
        %513 = vperm.xlu0 %512, %v309
        %v514 = vpop.permute.xlu0 %513
        %v516 = vadd.f32 %v492, %v499
        %v517 = vadd.f32 %v493, %v504
        %v518 = vadd.f32 %v494, %v509
        %v519 = vadd.f32 %v495, %v514
        %v520 = vadd.f32 %v386, %v516
        %v521 = vadd.f32 %v389, %v517
        %v522 = vadd.f32 %v394, %v518
        %v523 = vadd.f32 %v397, %v519
        %v524 = vmax.f32 %v520, 0.0
        %v525 = vmax.f32 %v521, 0.0
        %v526 = vmax.f32 %v522, 0.0
        %v527 = vmax.f32 %v523, 0.0
        %v528 = vpack.c.bf16 %v525, %v524
        %v529 = vpack.c.bf16 %v527, %v526
        %v530 = vstv %s311
        %v532 = vsel %vm338, %v310, 0
        %534 = vmatprep.subr.bf16.mxu0 0
        %535 = vmatpush1.bf16.msra.mxu0 %v528
        %536 = vmatprep.subr.bf16.mxu0 0
        %537 = vmatpush1.bf16.msra.mxu0 %v529
        %538 = vmatprep.subr.bf16.mxu0 0
        %539 = vmatpush1.bf16.msra.mxu0 0
        %540 = vmatprep.subr.bf16.mxu0 0
        %541 = vmatpush1.bf16.msra.mxu0 0
        %542 = vmatprep.subr.bf16.mxu0 0
        %543 = vmatpush1.bf16.msra.mxu0 0
        %544 = vmatprep.subr.bf16.mxu0 0
        %545 = vmatpush1.bf16.msra.mxu0 0
        %546 = vmatprep.subr.bf16.mxu0 0
        %547 = vmatpush1.bf16.msra.mxu0 0
        %548 = vmatprep.subr.bf16.mxu0 0
        %549 = vmatpush1.bf16.msra.mxu0 0
        %550 = vmatprep.subr.bf16.mxu0 0
        %551 = vmatpush1.bf16.msra.mxu0 0
        %552 = vmatprep.subr.bf16.mxu0 0
        %553 = vmatpush1.bf16.msra.mxu0 0
        %554 = vmatprep.subr.bf16.mxu0 0
        %555 = vmatpush1.bf16.msra.mxu0 0
        %556 = vmatprep.subr.bf16.mxu0 0
        %557 = vmatpush1.bf16.msra.mxu0 0
        %558 = vmatprep.subr.bf16.mxu0 0
        %559 = vmatpush1.bf16.msra.mxu0 0
        %560 = vmatprep.subr.bf16.mxu0 0
        %561 = vmatpush1.bf16.msra.mxu0 0
        %562 = vmatprep.subr.bf16.mxu0 0
        %563 = vmatpush1.bf16.msra.mxu0 0
        %564 = vmatprep.subr.bf16.mxu0 0
        %565 = vmatpush1.bf16.msra.mxu0 0
        %566 = vmatprep.mubr.bf16.mxu0 0
        %567 = vmatmul.mubr.bf16.gmra.mrb[0].mxu0 %v532
        %v568 = vpop.f32.mrb[0].mxu0
        %v569 = vadd.f32 %v530, %v568
        %v570 = vpop.f32.mrb[0].mxu0
        %v571 = vpop.f32.mrb[0].mxu0
        %v572 = vpop.f32.mrb[0].mxu0
        %573 = vdwg.mxu0
        %v574 = vmax.f32 %v569, 0.0
        %v575 = vadd.f32 %v458, %v516
        %v576 = vadd.f32 %v461, %v517
        %v577 = vadd.f32 %v466, %v518
        %v578 = vadd.f32 %v469, %v519
        %v579 = vmax.f32 %v575, 0.0
        %v580 = vmax.f32 %v576, 0.0
        %v581 = vmax.f32 %v577, 0.0
        %v582 = vmax.f32 %v578, 0.0
        %v583 = vpack.c.bf16 %v580, %v579
        %v584 = vpack.c.bf16 %v582, %v581
        %585 = vmatprep.subr.bf16.mxu0 0
        %586 = vmatpush1.bf16.msra.mxu0 %v583
        %587 = vmatprep.subr.bf16.mxu0 0
        %588 = vmatpush1.bf16.msra.mxu0 %v584
        %589 = vmatprep.subr.bf16.mxu0 0
        %590 = vmatpush1.bf16.msra.mxu0 0
        %591 = vmatprep.subr.bf16.mxu0 0
        %592 = vmatpush1.bf16.msra.mxu0 0
        %593 = vmatprep.subr.bf16.mxu0 0
        %594 = vmatpush1.bf16.msra.mxu0 0
        %595 = vmatprep.subr.bf16.mxu0 0
        %596 = vmatpush1.bf16.msra.mxu0 0
        %597 = vmatprep.subr.bf16.mxu0 0
        %598 = vmatpush1.bf16.msra.mxu0 0
        %599 = vmatprep.subr.bf16.mxu0 0
        %600 = vmatpush1.bf16.msra.mxu0 0
        %601 = vmatprep.subr.bf16.mxu0 0
        %602 = vmatpush1.bf16.msra.mxu0 0
        %603 = vmatprep.subr.bf16.mxu0 0
        %604 = vmatpush1.bf16.msra.mxu0 0
        %605 = vmatprep.subr.bf16.mxu0 0
        %606 = vmatpush1.bf16.msra.mxu0 0
        %607 = vmatprep.subr.bf16.mxu0 0
        %608 = vmatpush1.bf16.msra.mxu0 0
        %609 = vmatprep.subr.bf16.mxu0 0
        %610 = vmatpush1.bf16.msra.mxu0 0
        %611 = vmatprep.subr.bf16.mxu0 0
        %612 = vmatpush1.bf16.msra.mxu0 0
        %613 = vmatprep.subr.bf16.mxu0 0
        %614 = vmatpush1.bf16.msra.mxu0 0
        %615 = vmatprep.subr.bf16.mxu0 0
        %616 = vmatpush1.bf16.msra.mxu0 0
        %617 = vmatprep.mubr.bf16.mxu0 0
        %618 = vmatmul.mubr.bf16.gmra.mrb[0].mxu0 %v532
        %v619 = vpop.f32.mrb[0].mxu0
        %v620 = vadd.f32 %v530, %v619
        %v621 = vpop.f32.mrb[0].mxu0
        %v622 = vpop.f32.mrb[0].mxu0
        %v623 = vpop.f32.mrb[0].mxu0
        %624 = vdwg.mxu0
        %v625 = vmax.f32 %v620, 0.0
        %v626 = vmax.f32 %v574, %v625
        %v627 = vsub.f32 %v574, %v626
        %v628 = vmul.f32 %v627, 1.442695
        %v629 = vpow.pop %v628
        %v630 = vsub.f32 %v625, %v626
        %v631 = vmul.f32 %v630, 1.442695
        %v632 = vpow.pop %v631
        %v633 = vadd.f32 %v629, %v632
        %v634 = vrcp.pop %v633
        %v635 = vmul.f32 %v629, %v634
        %v636 = vlaneseq
        %v637 = vshrl.u32 %v636, 7
        %v638 = vsub.s32 0, %v637
        %v639 = vrot.slane %v635, %v638
        %v640 = vmul.f32 %v524, %v639
        %v641 = vmul.f32 %v525, %v639
        %v642 = vmul.f32 %v526, %v639
        %v643 = vmul.f32 %v527, %v639
        %v644 = vmul.f32 %v632, %v634
        %v645 = vlaneseq
        %v646 = vshrl.u32 %v645, 7
        %v647 = vsub.s32 0, %v646
        %v648 = vrot.slane %v644, %v647
        %v649 = vmul.f32 %v579, %v648
        %v650 = vmul.f32 %v580, %v648
        %v651 = vmul.f32 %v581, %v648
        %v652 = vmul.f32 %v582, %v648
        %v653 = vadd.f32 %v640, %v649
        %v654 = vadd.f32 %v641, %v650
        %v655 = vadd.f32 %v642, %v651
        %v656 = vadd.f32 %v643, %v652
        %v657 = vld [vmem:[%s5] sm:$0xf]
        %v658 = vld [vmem:[%s5 + $0x4] sm:$0xf]
        %v659 = vld [vmem:[%s5 + $0x8] sm:$0xf]
        %v660 = vld [vmem:[%s5 + $0xc] sm:$0xf]
        %v661 = vpack.c.bf16 %v654, %v653
        %v662 = vpack.c.bf16 %v656, %v655
        %v663 = vld [vmem:[%s6] sm:$0xff]
        %v664 = vld [vmem:[%s6 + $0x8] sm:$0xff]
        %v665 = vld [vmem:[%s6 + $0x10] sm:$0xff]
        %v666 = vld [vmem:[%s6 + $0x18] sm:$0xff]
        %668 = vset.pattern.permute.xlu0 0
        %669 = vperm.xlu0 %668, %v663
        %v670 = vpop.permute.xlu0 %669
        %673 = vset.pattern.permute.xlu0 0
        %674 = vperm.xlu0 %673, %v664
        %v675 = vpop.permute.xlu0 %674
        %678 = vset.pattern.permute.xlu0 0
        %679 = vperm.xlu0 %678, %v665
        %v680 = vpop.permute.xlu0 %679
        %683 = vset.pattern.permute.xlu0 0
        %684 = vperm.xlu0 %683, %v666
        %v685 = vpop.permute.xlu0 %684
        %v691 = vunpack.c.l.b16 %v657
        %v692 = vunpack.c.l.b16 %v658
        %v693 = vunpack.c.l.b16 %v659
        %v694 = vunpack.c.l.b16 %v660
        %v695 = vpack.c.b16 %v692, %v691
        %v696 = vpack.c.b16 %v694, %v693
        %v698 = vsel %vm338, %v695, 0
        %v701 = vsel %vm338, %v696, 0
        %703 = vmatprep.subr.bf16.mxu0 0
        %704 = vmatpush1.bf16.msra.mxu0 %v661
        %705 = vmatprep.subr.bf16.mxu0 0
        %706 = vmatpush1.bf16.msra.mxu0 %v662
        %707 = vmatprep.subr.bf16.mxu0 0
        %708 = vmatpush1.bf16.msra.mxu0 0
        %709 = vmatprep.subr.bf16.mxu0 0
        %710 = vmatpush1.bf16.msra.mxu0 0
        %711 = vmatprep.subr.bf16.mxu0 0
        %712 = vmatpush1.bf16.msra.mxu0 0
        %713 = vmatprep.subr.bf16.mxu0 0
        %714 = vmatpush1.bf16.msra.mxu0 0
        %715 = vmatprep.subr.bf16.mxu0 0
        %716 = vmatpush1.bf16.msra.mxu0 0
        %717 = vmatprep.subr.bf16.mxu0 0
        %718 = vmatpush1.bf16.msra.mxu0 0
        %719 = vmatprep.subr.bf16.mxu0 0
        %720 = vmatpush1.bf16.msra.mxu0 0
        %721 = vmatprep.subr.bf16.mxu0 0
        %722 = vmatpush1.bf16.msra.mxu0 0
        %723 = vmatprep.subr.bf16.mxu0 0
        %724 = vmatpush1.bf16.msra.mxu0 0
        %725 = vmatprep.subr.bf16.mxu0 0
        %726 = vmatpush1.bf16.msra.mxu0 0
        %727 = vmatprep.subr.bf16.mxu0 0
        %728 = vmatpush1.bf16.msra.mxu0 0
        %729 = vmatprep.subr.bf16.mxu0 0
        %730 = vmatpush1.bf16.msra.mxu0 0
        %731 = vmatprep.subr.bf16.mxu0 0
        %732 = vmatpush1.bf16.msra.mxu0 0
        %733 = vmatprep.subr.bf16.mxu0 0
        %734 = vmatpush1.bf16.msra.mxu0 0
        %735 = vmatprep.mubr.bf16.mxu0 0
        %736 = vmatmul.mubr.bf16.gmra.mrb[0].mxu0 %v698
        %v737 = vpop.f32.mrb[0].mxu0
        %v738 = vadd.f32 %v670, %v737
        %v739 = vpop.f32.mrb[0].mxu0
        %v740 = vpop.f32.mrb[0].mxu0
        %v741 = vadd.f32 %v675, %v740
        %v742 = vpop.f32.mrb[0].mxu0
        %743 = vmatprep.mubr.bf16.mxu0 0
        %744 = vmatmul.mubr.bf16.gmra.mrb[0].mxu0 %v701
        %v745 = vpop.f32.mrb[0].mxu0
        %v746 = vadd.f32 %v680, %v745
        %v747 = vpop.f32.mrb[0].mxu0
        %v748 = vpop.f32.mrb[0].mxu0
        %v749 = vadd.f32 %v685, %v748
        %v750 = vpop.f32.mrb[0].mxu0
        %751 = vdwg.mxu0
        %v752 = vmax.f32 %v738, 0.0
        %v753 = vmax.f32 %v741, 0.0
        %v754 = vmax.f32 %v746, 0.0
        %v755 = vmax.f32 %v749, 0.0
        %756 = vst [vmem:[%s296] sm:$0xff] %v752
        %757 = vst [vmem:[%s296 + $0x8] sm:$0xff] %v753
        %758 = vst [vmem:[%s296 + $0x10] sm:$0xff] %v754
        %759 = vst [vmem:[%s296 + $0x18] sm:$0xff] %v755
        %s760 = sand.u32 %s185, 1
        %s761 = scalar_lea.sflag [#allocation5], %s760
        %s762 = sand.u32 %s185, 1
        %s763 = smul.addr %s762, 32
        %s764 = scalar_lea.vmem [#allocation6], %s763
        // Predicated region
        $region53: #{tpu_custom_call.1} parent=47 // pred_check
          %p765 = pneg %p195
        $region54: #{tpu_custom_call.1} parent=47 // pred_check_branch
          %767 = sbr.rel (%p765) target = $region56
        $region55: #{tpu_custom_call.1} parent=47 // pred_region
          %s769 = ssub.s32 512, 512
          %770 = vsyncadd %s761, %s769
          %s771 = smul.addr %s25, 128
          %s772 = scalar_lea.hbm %s7, %s771
          %s773 = sshll.u32 %s764, 4
          %s774 = int_to_ptr.vmem [resolvable:$true] %s773
          %779 = dma.vmem_to_hbm [thread:$0]  %s774, 512, %s772, %s761, 128, 256, 8
        $region56: #{tpu_custom_call.1} parent=47 // pred_fallthru
          _
      $region48: #{tpu_custom_call.1} parent=5 // pred_fallthru
        _
      %p780 = scmp.le.s32.totalorder 2, %s20
      // Predicated region
      $region57: #{tpu_custom_call.1} parent=5 // pred_check
        %p781 = pneg %p780
      $region58: #{tpu_custom_call.1} parent=5 // pred_check_branch
        %783 = sbr.rel (%p781) target = $region60
      $region59: #{tpu_custom_call.1} parent=5 // pred_region
        %s784 = ssub.s32 %s20, 2
        // Predicated region
        $region61: #{tpu_custom_call.1} parent=59 // pred_check
          %p785 = pneg %p201
        $region62: #{tpu_custom_call.1} parent=59 // pred_check_branch
          %787 = sbr.rel (%p785) target = $region64
        $region63: #{tpu_custom_call.1} parent=59 // pred_region
          %s788 = sand.u32 %s186, 1
          %s789 = scalar_lea.sflag [#allocation5], %s788
          %s790 = sand.u32 %s186, 1
          %s791 = smul.addr %s790, 32
          %s792 = scalar_lea.vmem [#allocation6], %s791
          %793 = dma.done %s789, 512
        $region64: #{tpu_custom_call.1} parent=59 // pred_fallthru
          _
      $region60: #{tpu_custom_call.1} parent=5 // pred_fallthru
        _
    $region6: #{tpu_custom_call.1} parent=1 // loop_footer
      %s24 = sadd.s32 1, %s20
    $region7: #{tpu_custom_call.1} parent=1 // loop_footer_branch
      %19 = sbr.rel target = $region3
    $region8: #{tpu_custom_call.1} parent=1 // loop_exit
      _
    %794 = vsyncpa [#allocation4], 1
    %s795 = scalar_lea.sflag [#allocation4], 1
    %796 = vsyncpa %s795, 1
    %797 = vsyncpa [#allocation5], 1
    %s798 = scalar_lea.sflag [#allocation5], 1
    %799 = vsyncpa %s798, 1

</llo_original>
